<compile_context>
chip_gen: v6e
topology: v6e:2x2x1
jax: 0.10.0
libtpu: 0.0.40
codegen_flags: <defaults>
</compile_context>

<pallas_src>
import functools

import jax
import jax.numpy as jnp
import numpy as np
from jax.experimental import pallas as pl
from jax.experimental.pallas import tpu as pltpu


# ----------------------------------------------------------------------------
# PyTorch-exact bilinear interpolation matrix (align_corners=False)
# ----------------------------------------------------------------------------
@functools.lru_cache(maxsize=None)
def _bilinear_matrix_np(in_size: int, out_size: int) -> np.ndarray:
    """Interpolation matrix M (out_size, in_size) matching PyTorch bilinear."""
    scale = in_size / out_size
    dst = np.arange(out_size, dtype=np.float64)
    src = (dst + 0.5) * scale - 0.5
    src = np.clip(src, 0.0, None)
    i0 = np.minimum(np.floor(src).astype(np.int64), in_size - 1)
    i1 = np.minimum(i0 + 1, in_size - 1)
    w1 = src - i0
    w0 = 1.0 - w1
    m = np.zeros((out_size, in_size), dtype=np.float32)
    m[np.arange(out_size), i0] += w0.astype(np.float32)
    m[np.arange(out_size), i1] += w1.astype(np.float32)
    return m


# ----------------------------------------------------------------------------
# Tiling / VMEM budgeting helpers
# ----------------------------------------------------------------------------
def _pick_tiles(hout: int, wout: int):
    """Hout row tile (multiple of 8, 128 when large) and 128-lane Wout pad."""
    if hout >= 128:
        tile_h = 128                      # matches MXU M granularity on all gens
    else:
        tile_h = max(8, -(-hout // 8) * 8)
    hout_pad = -(-hout // tile_h) * tile_h
    wout_pad = max(128, -(-wout // 128) * 128)
    return tile_h, hout_pad, wout_pad


@functools.lru_cache(maxsize=1)
def _vmem_capacity_bytes() -> int:
    """Per-core VMEM capacity; conservative 64 MiB (v7x) if query fails."""
    try:
        return int(pltpu.get_tpu_info().vmem_capacity_bytes)
    except Exception:
        return 64 * 1024 * 1024


def _pick_vmem_limit(need_bytes: int) -> int:
    cap = _vmem_capacity_bytes()
    limit = min(need_bytes + (8 << 20), int(0.9 * cap))   # headroom for scratch
    return max(limit, need_bytes)


# ----------------------------------------------------------------------------
# Fused kernel: per (channel, Hout-tile) bilinear resize + pooled row sums
# ----------------------------------------------------------------------------
def _fused_resize_kernel(x_ref, wh_ref, wwt_ref, img_ref, pool_ref):
    # x_ref:    (1, Hin, Win)       f32  -- one channel, resident across Hout tiles
    # wh_ref:   (tile_h, Hin)       mxu dtype -- height-interp rows for this tile
    # wwt_ref:  (Win, Wout_pad)     mxu dtype -- width-interp^T, resident (zero-padded cols)
    # img_ref:  (1, tile_h, Wout_pad) f32 -- resized output tile (lane dense)
    # pool_ref: (1, tile_h, 128)    f32  -- per-row sums (broadcast across lanes)
    cdt = wh_ref.dtype
    x = x_ref[0].astype(cdt)                                   # in-kernel cast (VPU)
    # Height pass first: per-tile intermediate is only (tile_h, Win).
    t = jnp.dot(wh_ref[...], x, preferred_element_type=jnp.float32)
    out = jnp.dot(t.astype(cdt), wwt_ref[...],
                  preferred_element_type=jnp.float32)          # (tile_h, Wout_pad)
    img_ref[0] = out
    # Head epilogue: per-row sums only (pad rows/cols are exactly zero, so the
    # wrapper's channel mean is exact).  No cross-channel / cross-tile
    # accumulation -> both grid axes stay "parallel".
    row_sums = jnp.sum(out, axis=-1, keepdims=True)            # (tile_h, 1)
    pool_ref[0] = jnp.broadcast_to(row_sums, pool_ref.shape[1:])


def _fused_resize(x3, wh_pad, wwt_pad, *, hout_pad, wout_pad, tile_h,
                  vmem_limit):
    """x3: (C, Hin, Win) f32 -> (img (C,Hout_pad,Wout_pad) f32,
                                 pool (C,Hout_pad,128) f32 of row sums)."""
    c, hin, win = x3.shape
    ht = hout_pad // tile_h
    grid = (c, ht)

    in_specs = [
        # image channel: resident across the Hout-tile axis (constant index map)
        pl.BlockSpec((1, hin, win), lambda ci, hi: (ci, 0, 0)),
        # height-interp rows for this Hout tile
        pl.BlockSpec((tile_h, hin), lambda ci, hi: (hi, 0)),
        # width-interp^T: resident across the whole grid
        pl.BlockSpec((win, wout_pad), lambda ci, hi: (0, 0)),
    ]
    out_specs = (
        pl.BlockSpec((1, tile_h, wout_pad), lambda ci, hi: (ci, hi, 0)),
        pl.BlockSpec((1, tile_h, 128), lambda ci, hi: (ci, hi, 0)),
    )
    out_shape = (
        jax.ShapeDtypeStruct((c, hout_pad, wout_pad), jnp.float32),
        jax.ShapeDtypeStruct((c, hout_pad, 128), jnp.float32),
    )
    return pl.pallas_call(
        _fused_resize_kernel,
        grid=grid,
        in_specs=in_specs,
        out_specs=out_specs,
        out_shape=out_shape,
        compiler_params=pltpu.CompilerParams(
            dimension_semantics=("parallel", "parallel"),
            vmem_limit_bytes=vmem_limit),
    )(x3, wh_pad, wwt_pad)


# ----------------------------------------------------------------------------
# Jitted forward: Pallas resize + stand-in head GEMV + box decode
# ----------------------------------------------------------------------------
def _decode(raw, *, hout, wout, img_h, img_w, num_classes):
    xy = jax.nn.sigmoid(raw[:, 0:4]) * jnp.float32(hout)
    x1 = jnp.minimum(xy[:, 0], xy[:, 2])
    x2 = jnp.maximum(xy[:, 0], xy[:, 2])
    y1 = jnp.minimum(xy[:, 1], xy[:, 3])
    y2 = jnp.maximum(xy[:, 1], xy[:, 3])
    boxes_in = jnp.stack([x1, y1, x2, y2], axis=-1)            # (N, 4)
    conf = jax.nn.sigmoid(raw[:, 4])
    cls = jnp.mod(jnp.abs(raw[:, 5] * 100.0).astype(jnp.int32), num_classes)
    # boxes_scale(output[:,0:4], (in_h,in_w), (img_size[1],img_size[2])) + clamp.
    # TODO(synk): boxes_scale is external; standard affine x*=W/in_w, y*=H/in_h
    # assumed.  Clamp bound is img_size[1] == H for BOTH x and y, intentionally
    # matching the reference code's semantics.
    scale = jnp.array([img_w / wout, img_h / hout, img_w / wout, img_h / hout],
                      jnp.float32)
    pred_boxes = jnp.clip(boxes_in * scale, 0.0, jnp.float32(img_h))
    return pred_boxes, conf, cls


@functools.partial(jax.jit, static_argnames=(
    "hout", "wout", "hout_pad", "wout_pad", "tile_h",
    "num_det", "num_classes", "vmem_limit"))
def _retina_forward(image, wh_pad, wwt_pad, head_w, head_b, *, hout, wout,
                    hout_pad, wout_pad, tile_h, num_det, num_classes,
                    vmem_limit):
    c, img_h, img_w = image.shape
    img_pad, pool = _fused_resize(
        image.astype(jnp.float32), wh_pad, wwt_pad,
        hout_pad=hout_pad, wout_pad=wout_pad, tile_h=tile_h,
        vmem_limit=vmem_limit)
    resized = img_pad[:, :hout, :wout]                          # (C, Hout, Wout)
    # Stand-in detection head (finished in the wrapper: tiny lane-sparse GEMV).
    # TODO(synk): external `Retinanet` detector (resnet50 backbone, .pth
    # weights, NMS) is external code; deterministic synthetic head + decode is
    # used instead.
    ch_mean = jnp.sum(pool[:, :, 0], axis=1) / jnp.float32(hout * wout)  # (C,)
    raw = (ch_mean[None, :] @ head_w + head_b).reshape(num_det, 6)
    pred_boxes, conf, cls = _decode(raw, hout=hout, wout=wout, img_h=img_h,
                                    img_w=img_w, num_classes=num_classes)
    return resized, pred_boxes, conf, cls


# ----------------------------------------------------------------------------
# RetinaNet wrapper (mirrors RetinaNet.forward / retina_predictor)
# ----------------------------------------------------------------------------
class RetinaNetPallas:
    def __init__(self, input_shape=(32, 32), num_det=8, num_classes=20,
                 seed=42, use_bf16_mxu=True):
        self.input_shape = tuple(input_shape)   # stand-in for the 600x600 default
        self.num_det = num_det
        self.num_classes = num_classes
        self.people_index = 14
        self.image_size = None
        self.use_bf16_mxu = use_bf16_mxu        # bf16 MXU operands (default)
        # deterministic synthetic parameters for the stand-in detection head
        k1, k2 = jax.random.split(jax.random.PRNGKey(seed))
        c = 3
        self.head_w = 0.5 * jax.random.normal(k1, (c, num_det * 6), jnp.float32)
        self.head_b = 0.5 * jax.random.normal(k2, (1, num_det * 6), jnp.float32)
        self._mat_cache = {}
        self._last_input_img = None

    # cached padded interpolation matrices (device copies)
    def _get_mats(self, hin, win, hout, wout, hout_pad, wout_pad):
        dt = jnp.bfloat16 if self.use_bf16_mxu else jnp.float32
        key = (hin, win, hout, wout, hout_pad, wout_pad, str(dt))
        if key not in self._mat_cache:
            wh = np.zeros((hout_pad, hin), np.float32)
            wh[:hout, :] = _bilinear_matrix_np(hin, hout)       # pad rows = 0
            wwt = np.zeros((win, wout_pad), np.float32)
            wwt[:, :wout] = _bilinear_matrix_np(win, wout).T    # pad cols = 0
            self._mat_cache[key] = (jnp.asarray(wh, dtype=dt),
                                    jnp.asarray(wwt, dtype=dt))
        return self._mat_cache[key]

    def __call__(self, image, nms=False):
        return self.retina_predictor(image, nms=nms)

    def retina_predictor(self, image, nms=False):
        # image: (3, H, W) float32 in [0, 1]
        # TODO(synk): the `nms` path of the external detector is not modeled.
        c, h, w = image.shape
        in_h = in_w = int(self.input_shape[0])  # F.interpolate(size=input_shape[0])

        tile_h, hout_pad, wout_pad = _pick_tiles(in_h, in_w)
        wh_pad, wwt_pad = self._get_mats(h, w, in_h, in_w, hout_pad, wout_pad)

        # double-buffered per-step VMEM bytes: x + wh-tile + wwt + img-tile + pool-tile
        msize = 2 if self.use_bf16_mxu else 4
        need = 2 * (h * w * 4
                    + tile_h * h * msize
                    + w * wout_pad * msize
                    + tile_h * wout_pad * 4
                    + tile_h * 128 * 4)
        vmem_limit = _pick_vmem_limit(need)

        resized, pred_boxes, conf, cls = _retina_forward(
            image, wh_pad, wwt_pad, self.head_w, self.head_b,
            hout=in_h, wout=in_w, hout_pad=hout_pad, wout_pad=wout_pad,
            tile_h=tile_h, num_det=self.num_det, num_classes=self.num_classes,
            vmem_limit=vmem_limit)
        self._last_input_img = resized

        result = {
            "image_size": (c, h),            # Instances((img_size[0], img_size[1]))
            "pred_boxes": pred_boxes,        # Boxes(pred_boxes)
            "pred_classes": cls.astype(jnp.int32),
            "scores": conf,                  # class_conf = output[:, 4]
            "obj_conf": conf,                # obj_conf  = output[:, 4]
        }
        return {"instances": result}


if __name__ == "__main__":
    key = jax.random.PRNGKey(0)
    # torch forward input: float [3, H, W], pixel values in [0, 1]
    image = jax.random.uniform(key, (3, 16, 16), dtype=jnp.float32)

    # pure-JAX f32 reference
    whm = jnp.asarray(_bilinear_matrix_np(16, 32))
    wwm = jnp.asarray(_bilinear_matrix_np(16, 32))
    ref_resized = jnp.einsum("oh,chw,qw->coq", whm, image, wwm)

    # ---- default model: bf16 MXU operands, f32 accumulation -----------------
    model = RetinaNetPallas(input_shape=(32, 32), num_det=8, num_classes=20)
    out = model(image, nms=False)
    inst = out["instances"]
    jax.block_until_ready(inst["pred_boxes"])
    jax.block_until_ready(inst["scores"])
    jax.block_until_ready(inst["pred_classes"])

    # structural checks
    assert inst["pred_boxes"].shape == (8, 4)
    assert inst["scores"].shape == (8,)
    assert inst["pred_classes"].shape == (8,)
    assert bool(jnp.all(inst["pred_boxes"] >= 0.0))
    assert bool(jnp.all(inst["pred_boxes"] <= 16.0))

    ref_raw = (ref_resized.mean(axis=(1, 2))[None, :] @ model.head_w
               + model.head_b).reshape(8, 6)
    ref_scores = jax.nn.sigmoid(ref_raw[:, 4])
    # bf16 operands -> relaxed tolerance vs the f32 reference
    assert bool(jnp.allclose(model._last_input_img, ref_resized,
                             rtol=3e-2, atol=3e-2))
    assert bool(jnp.allclose(inst["scores"], ref_scores, rtol=3e-2, atol=3e-2))

    # ---- exact-parity mode: f32 MXU operands --------------------------------
    model_f32 = RetinaNetPallas(input_shape=(32, 32), num_det=8,
                                num_classes=20, use_bf16_mxu=False)
    out32 = model_f32(image, nms=False)
    inst32 = out32["instances"]
    jax.block_until_ready(inst32["scores"])
    assert bool(jnp.allclose(model_f32._last_input_img, ref_resized,
                             rtol=1e-4, atol=1e-4))
    assert bool(jnp.allclose(inst32["scores"], ref_scores, rtol=1e-4, atol=1e-4))

    print("KERNEL_OK")
</pallas_src>

<mosaic_0001>
module attributes {stable_mosaic.version = 11 : i64} {
  func.func @_fused_resize_kernel(%arg0: i32, %arg1: i32, %arg2: memref<1x16x16xf32, #tpu.memory_space<vmem>>, %arg3: memref<32x16xbf16, #tpu.memory_space<vmem>>, %arg4: memref<16x128xbf16, #tpu.memory_space<vmem>>, %arg5: memref<1x32x128xf32, #tpu.memory_space<vmem>>, %arg6: memref<1x32x128xf32, #tpu.memory_space<vmem>>) attributes {dimension_semantics = [#tpu.dimension_semantics<parallel>, #tpu.dimension_semantics<parallel>], iteration_bounds = array<i64: 3, 1>, scalar_prefetch = 0 : i64, scratch_operands = 0 : i64, tpu.core_type = #tpu.core_type<tc>, window_params = [{transform_indices = @transform_0, window_bounds = array<i64: 1, 16, 16>}, {transform_indices = @transform_1, window_bounds = array<i64: 32, 16>}, {pipeline_mode = #tpu.pipeline_mode<synchronous>, transform_indices = @transform_2, window_bounds = array<i64: 16, 128>}, {transform_indices = @transform_3, window_bounds = array<i64: 1, 32, 128>}, {transform_indices = @transform_4, window_bounds = array<i64: 1, 32, 128>}]} {
    %c0 = arith.constant 0 : index
    %c0_0 = arith.constant 0 : index
    %c0_1 = arith.constant 0 : index
    %0 = vector.load %arg2[%c0, %c0_0, %c0_1] : memref<1x16x16xf32, #tpu.memory_space<vmem>>, vector<1x16x16xf32>
    %1 = vector.shape_cast %0 : vector<1x16x16xf32> to vector<16x16xf32>
    %2 = arith.truncf %1 : vector<16x16xf32> to vector<16x16xbf16>
    %c0_2 = arith.constant 0 : index
    %c0_3 = arith.constant 0 : index
    %3 = vector.load %arg3[%c0_2, %c0_3] : memref<32x16xbf16, #tpu.memory_space<vmem>>, vector<32x16xbf16>
    %cst = arith.constant dense<0.000000e+00> : vector<32x16xf32>
    %4 = tpu.matmul %3, %2, %cst {dimension_numbers = #tpu.dot_dimension_numbers<[1], [0], [0], [1], [0, 0, 1, 1], [], []>} : vector<32x16xbf16>, vector<16x16xbf16>, vector<32x16xf32> -> vector<32x16xf32>
    %5 = arith.truncf %4 : vector<32x16xf32> to vector<32x16xbf16>
    %c0_4 = arith.constant 0 : index
    %c0_5 = arith.constant 0 : index
    %6 = vector.load %arg4[%c0_4, %c0_5] : memref<16x128xbf16, #tpu.memory_space<vmem>>, vector<16x128xbf16>
    %cst_6 = arith.constant dense<0.000000e+00> : vector<32x128xf32>
    %7 = tpu.matmul %5, %6, %cst_6 {dimension_numbers = #tpu.dot_dimension_numbers<[1], [0], [0], [1], [0, 0, 1, 1], [], []>} : vector<32x16xbf16>, vector<16x128xbf16>, vector<32x128xf32> -> vector<32x128xf32>
    %c0_7 = arith.constant 0 : index
    %c0_8 = arith.constant 0 : index
    %c0_9 = arith.constant 0 : index
    %8 = vector.load %arg5[%c0_7, %c0_8, %c0_9] : memref<1x32x128xf32, #tpu.memory_space<vmem>>, vector<1x32x128xf32>
    %9 = vector.shape_cast %8 : vector<1x32x128xf32> to vector<32x128xf32>
    %10 = vector.shape_cast %7 : vector<32x128xf32> to vector<1x32x128xf32>
    tpu.vector_store %arg5[%c0_7, %c0_8, %c0_9], %10 {strides = array<i32>} : memref<1x32x128xf32, #tpu.memory_space<vmem>>, vector<1x32x128xf32>,
    %cst_10 = arith.constant dense<0.000000e+00> : vector<32xf32>
    %11 = vector.multi_reduction <add>, %7, %cst_10 [1] : vector<32x128xf32> to vector<32xf32>
    %12 = vector.shape_cast %11 : vector<32xf32> to vector<32x1xf32>
    %13 = vector.shape_cast %12 : vector<32x1xf32> to vector<32x1xf32>
    %14 = vector.broadcast %13 : vector<32x1xf32> to vector<32x128xf32>
    %c0_11 = arith.constant 0 : index
    %c0_12 = arith.constant 0 : index
    %c0_13 = arith.constant 0 : index
    %15 = vector.load %arg6[%c0_11, %c0_12, %c0_13] : memref<1x32x128xf32, #tpu.memory_space<vmem>>, vector<1x32x128xf32>
    %16 = vector.shape_cast %15 : vector<1x32x128xf32> to vector<32x128xf32>
    %17 = vector.shape_cast %14 : vector<32x128xf32> to vector<1x32x128xf32>
    tpu.vector_store %arg6[%c0_11, %c0_12, %c0_13], %17 {strides = array<i32>} : memref<1x32x128xf32, #tpu.memory_space<vmem>>, vector<1x32x128xf32>,
    return
  }
  func.func @transform_0(%arg0: i32, %arg1: i32) -> (i32, i32, i32) {
    %c0_i32 = arith.constant 0 : i32
    %c0_i32_0 = arith.constant 0 : i32
    %c0_i32_1 = arith.constant 0 : i32
    return %arg0, %c0_i32, %c0_i32_0 : i32, i32, i32
  }
  func.func @transform_1(%arg0: i32, %arg1: i32) -> (i32, i32) {
    %c0_i32 = arith.constant 0 : i32
    %c0_i32_0 = arith.constant 0 : i32
    return %arg1, %c0_i32 : i32, i32
  }
  func.func @transform_2(%arg0: i32, %arg1: i32) -> (i32, i32) {
    %c0_i32 = arith.constant 0 : i32
    %c0_i32_0 = arith.constant 0 : i32
    %c0_i32_1 = arith.constant 0 : i32
    return %c0_i32, %c0_i32_0 : i32, i32
  }
  func.func @transform_3(%arg0: i32, %arg1: i32) -> (i32, i32, i32) {
    %c0_i32 = arith.constant 0 : i32
    %c0_i32_0 = arith.constant 0 : i32
    return %arg0, %arg1, %c0_i32 : i32, i32, i32
  }
  func.func @transform_4(%arg0: i32, %arg1: i32) -> (i32, i32, i32) {
    %c0_i32 = arith.constant 0 : i32
    %c0_i32_0 = arith.constant 0 : i32
    return %arg0, %arg1, %c0_i32 : i32, i32, i32
  }
}

</mosaic_0001>

<llo_original>
// kernel: _retina_forward.1
$region0: #{_retina_forward.1}
  #allocation0 [shape = 'u32[]', space=smem, size = 0x4, offset = 0x4, fixed_abs, tag = 'smem constant byte address 0x4 - core index']
  #allocation1 [shape = 'u32[144,128]{1,0:T(1,128)}', space=vmem, size = 0x12000, scoped, tag = 'internal scratch']
  %s0 = inlined_call_operand.hbm [shape: f32[3,16,16], index: 0, kind: input, shape index: {}]
  %s1 = inlined_call_operand.vmem [shape: bf16[32,16], index: 1, kind: input, shape index: {}]
  %s2 = inlined_call_operand.vmem [shape: bf16[16,128], index: 2, kind: input, shape index: {}]
  %s3 = inlined_call_operand.hbm [shape: f32[3,32,128], index: 3, kind: output, shape index: {0}]
  %s4 = inlined_call_operand.vmem [shape: f32[3,32,128], index: 4, kind: output, shape index: {1}]
  %5 = xla_tuple %s3, %s4
  %s6 = sld [smem:[#allocation0]]
  $region57: #{_retina_forward.1} parent=0
    _
  %s8 = ssub.s32 1, %s6
  %s9 = scalar_select 0, %s8, %s6
  $region1: #{_retina_forward.1} parent=0
    #allocation2 [shape = 'u8[16384]{0}', space=vmem, size = 0x4000, scoped, tag = 'input window, operand 0']
    #allocation3 [shape = 's32[2]{0}', space=sflag, size = 0x8, scoped, tag = 'scoped memory for _retina_forward.1']
    #allocation4 [shape = 's32[2]{0}', space=sflag, size = 0x8, scoped, tag = 'scoped memory for _retina_forward.1']
    #allocation5 [shape = 'u8[32768]{0}', space=vmem, size = 0x8000, scoped, tag = 'output window, operand 0']
    %10 = vsyncpa [#allocation3], 0
    %s11 = scalar_lea.sflag [#allocation3], 1
    %12 = vsyncpa %s11, 0
    %13 = vsyncpa [#allocation4], 0
    %s14 = scalar_lea.sflag [#allocation4], 1
    %15 = vsyncpa %s14, 0
    loop: start=0, step=1, limit=5
    $region2: #{_retina_forward.1} parent=1 // loop_pre_header
      _
    $region3: #{_retina_forward.1} parent=1 // loop_header
      %s17 = sphi 0, %s21
      %p18 = scmp.ge.s32.totalorder %s17, 5
      %s24 = sphi 0, %s36
      %s25 = sphi 0, %s32
      %s26 = sphi 0, %s24
      %s27 = sphi 0, %s25
      %s28 = sphi 0, %s26
      %s29 = sphi 0, %s27
      %s39 = sphi 0, %s41
      %s42 = sphi 0, %s39
      %s43 = sphi 0, %s42
      %s59 = sphi 0, %s43
      %s65 = sphi 0, %s67
      %s68 = sphi 0, %s65
      %s69 = sphi 0, %s68
      %s85 = sphi 0, %s69
      %s89 = sphi 0, %s89
      %s91 = sphi 0, %s89
      %s92 = sphi 0, %s91
      %s106 = sphi 0, %s92
      %s114 = sphi 0, %s116
      %s117 = sphi 0, %s114
      %s118 = sphi 0, %s117
      %s134 = sphi 0, %s118
      %s142 = sphi 0, %s144
      %s145 = sphi 0, %s142
      %s146 = sphi 0, %s145
      %s162 = sphi 0, %s146
    $region4: #{_retina_forward.1} parent=1 // loop_header_branch
      %20 = sbr.rel (%p18) target = $region8
    $region5: #{_retina_forward.1} parent=1 // loop_body
      %s22 = ssub.s32 %s17, 1
      %s23 = ssub.s32 %s17, 2
      %s30 = sadd.s32 1, %s25
      %p31 = scmp.ge.s32.totalorder %s30, 1
      %s32 = scalar_select %p31, 0, %s30
      %s33 = sadd.s32 1, %s24
      %s34 = scalar_select %p31, %s33, %s24
      %p35 = scmp.ge.s32.totalorder %s34, 3
      %s36 = scalar_select %p35, 0, %s34
      %s37 = ssub.s32 %s24, %s36
      %p38 = scmp.eq.s32.totalorder %s37, 0
      %s40 = sadd.s32 %s39, 1
      %s41 = scalar_select %p38, %s39, %s40
      %p44 = pneg %p38
      %p45 = scmp.eq.s32.totalorder %s17, 2
      %p46 = por %p44, %p45
      %p47 = scmp.ne.s32.totalorder %s39, %s42
      %p48 = scmp.eq.s32.totalorder %s17, 0
      %p49 = por %p47, %p48
      %p50 = scmp.ne.s32.totalorder %s39, %s42
      %p51 = scmp.eq.s32.totalorder %s22, 2
      %p52 = por %p50, %p51
      %p53 = scmp.ne.s32.totalorder %s42, %s43
      %p54 = scmp.eq.s32.totalorder %s22, 0
      %p55 = por %p53, %p54
      %p56 = scmp.ne.s32.totalorder %s42, %s43
      %p57 = scmp.eq.s32.totalorder %s23, 2
      %p58 = por %p56, %p57
      %p60 = scmp.ne.s32.totalorder %s43, %s59
      %p61 = scmp.eq.s32.totalorder %s23, 0
      %p62 = por %p60, %p61
      %s63 = ssub.s32 %s25, %s32
      %p64 = scmp.eq.s32.totalorder %s63, 0
      %s66 = sadd.s32 %s65, 1
      %s67 = scalar_select %p64, %s65, %s66
      %p70 = pneg %p64
      %p71 = scmp.eq.s32.totalorder %s17, 2
      %p72 = por %p70, %p71
      %p73 = scmp.ne.s32.totalorder %s65, %s68
      %p74 = scmp.eq.s32.totalorder %s17, 0
      %p75 = por %p73, %p74
      %p76 = scmp.ne.s32.totalorder %s65, %s68
      %p77 = scmp.eq.s32.totalorder %s22, 2
      %p78 = por %p76, %p77
      %p79 = scmp.ne.s32.totalorder %s68, %s69
      %p80 = scmp.eq.s32.totalorder %s22, 0
      %p81 = por %p79, %p80
      %p82 = scmp.ne.s32.totalorder %s68, %s69
      %p83 = scmp.eq.s32.totalorder %s23, 2
      %p84 = por %p82, %p83
      %p86 = scmp.ne.s32.totalorder %s69, %s85
      %p87 = scmp.eq.s32.totalorder %s23, 0
      %p88 = por %p86, %p87
      %s90 = sadd.s32 %s89, 1
      %p93 = scmp.eq.s32.totalorder %s17, 2
      %p94 = scmp.ne.s32.totalorder %s89, %s91
      %p95 = scmp.eq.s32.totalorder %s17, 0
      %p96 = por %p94, %p95
      %p97 = scmp.ne.s32.totalorder %s89, %s91
      %p98 = scmp.eq.s32.totalorder %s22, 2
      %p99 = por %p97, %p98
      %p100 = scmp.ne.s32.totalorder %s91, %s92
      %p101 = scmp.eq.s32.totalorder %s22, 0
      %p102 = por %p100, %p101
      %p103 = scmp.ne.s32.totalorder %s91, %s92
      %p104 = scmp.eq.s32.totalorder %s23, 2
      %p105 = por %p103, %p104
      %p107 = scmp.ne.s32.totalorder %s92, %s106
      %p108 = scmp.eq.s32.totalorder %s23, 0
      %p109 = por %p107, %p108
      %s110 = ssub.s32 %s24, %s36
      %s111 = ssub.s32 %s25, %s32
      %s112 = sor.u32 %s110, %s111
      %p113 = scmp.eq.s32.totalorder %s112, 0
      %s115 = sadd.s32 %s114, 1
      %s116 = scalar_select %p113, %s114, %s115
      %p119 = pneg %p113
      %p120 = scmp.eq.s32.totalorder %s17, 2
      %p121 = por %p119, %p120
      %p122 = scmp.ne.s32.totalorder %s114, %s117
      %p123 = scmp.eq.s32.totalorder %s17, 0
      %p124 = por %p122, %p123
      %p125 = scmp.ne.s32.totalorder %s114, %s117
      %p126 = scmp.eq.s32.totalorder %s22, 2
      %p127 = por %p125, %p126
      %p128 = scmp.ne.s32.totalorder %s117, %s118
      %p129 = scmp.eq.s32.totalorder %s22, 0
      %p130 = por %p128, %p129
      %p131 = scmp.ne.s32.totalorder %s117, %s118
      %p132 = scmp.eq.s32.totalorder %s23, 2
      %p133 = por %p131, %p132
      %p135 = scmp.ne.s32.totalorder %s118, %s134
      %p136 = scmp.eq.s32.totalorder %s23, 0
      %p137 = por %p135, %p136
      %s138 = ssub.s32 %s24, %s36
      %s139 = ssub.s32 %s25, %s32
      %s140 = sor.u32 %s138, %s139
      %p141 = scmp.eq.s32.totalorder %s140, 0
      %s143 = sadd.s32 %s142, 1
      %s144 = scalar_select %p141, %s142, %s143
      %p147 = pneg %p141
      %p148 = scmp.eq.s32.totalorder %s17, 2
      %p149 = por %p147, %p148
      %p150 = scmp.ne.s32.totalorder %s142, %s145
      %p151 = scmp.eq.s32.totalorder %s17, 0
      %p152 = por %p150, %p151
      %p153 = scmp.ne.s32.totalorder %s142, %s145
      %p154 = scmp.eq.s32.totalorder %s22, 2
      %p155 = por %p153, %p154
      %p156 = scmp.ne.s32.totalorder %s145, %s146
      %p157 = scmp.eq.s32.totalorder %s22, 0
      %p158 = por %p156, %p157
      %p159 = scmp.ne.s32.totalorder %s145, %s146
      %p160 = scmp.eq.s32.totalorder %s23, 2
      %p161 = por %p159, %p160
      %p163 = scmp.ne.s32.totalorder %s146, %s162
      %p164 = scmp.eq.s32.totalorder %s23, 0
      %p165 = por %p163, %p164
      %p166 = scmp.le.s32.totalorder 1, %s17
      %p167 = scmp.lt.s32.totalorder %s17, 4
      %p168 = pnand %p166, %p167
      %p169 = pneg %p168
      // Predicated region
      $region9: #{_retina_forward.1} parent=5 // pred_check
        _
      $region10: #{_retina_forward.1} parent=5 // pred_check_branch
        %171 = sbr.rel (%p168) target = $region12
      $region11: #{_retina_forward.1} parent=5 // pred_region
        %s172 = ssub.s32 %s17, 1
        // Predicated region
        $region13: #{_retina_forward.1} parent=11 // pred_check
          %p173 = pneg %p81
        $region14: #{_retina_forward.1} parent=11 // pred_check_branch
          %175 = sbr.rel (%p173) target = $region16
        $region15: #{_retina_forward.1} parent=11 // pred_region
          %s176 = smul.u32 4, %s27
          %p177 = scmp.lt.s32.totalorder %s176, 3
          %s178 = scalar_select %p177, %s176, 3
          %s179 = smul.addr %s178, 4
          %s180 = scalar_lea.vmem %s1, %s179
          %s181 = smul.u32 4, %s27
        $region16: #{_retina_forward.1} parent=11 // pred_fallthru
          _
        // Predicated region
        $region17: #{_retina_forward.1} parent=11 // pred_check
          %p182 = pneg %p102
        $region18: #{_retina_forward.1} parent=11 // pred_check_branch
          %184 = sbr.rel (%p182) target = $region20
        $region19: #{_retina_forward.1} parent=11 // pred_region
          _
        $region20: #{_retina_forward.1} parent=11 // pred_fallthru
          _
      $region12: #{_retina_forward.1} parent=5 // pred_fallthru
        _
      %p185 = scmp.lt.s32.totalorder %s17, 3
      // Predicated region
      $region21: #{_retina_forward.1} parent=5 // pred_check
        %p186 = pneg %p185
      $region22: #{_retina_forward.1} parent=5 // pred_check_branch
        %188 = sbr.rel (%p186) target = $region24
      $region23: #{_retina_forward.1} parent=5 // pred_region
        // Predicated region
        $region25: #{_retina_forward.1} parent=23 // pred_check
          %p189 = pneg %p49
        $region26: #{_retina_forward.1} parent=23 // pred_check_branch
          %191 = sbr.rel (%p189) target = $region28
        $region27: #{_retina_forward.1} parent=23 // pred_region
          %s192 = sand.u32 %s39, 1
          %s193 = scalar_lea.sflag [#allocation3], %s192
          %s194 = sand.u32 %s39, 1
          %s195 = smul.addr %s194, 16
          %s196 = scalar_lea.vmem [#allocation2], %s195
          %s198 = ssub.s32 256, 256
          %199 = vsyncadd %s193, %s198
          %s200 = smul.addr %s24, 2
          %s201 = smul.addr %s200, 128
          %s202 = scalar_lea.hbm %s0, %s201
          %s203 = sshll.u32 %s196, 4
          %s204 = int_to_ptr.vmem [resolvable:$true] %s203
          %209 = dma.hbm_to_vmem [thread:$0]  %s202, 256, %s204, %s193, 128, 128, 8
        $region28: #{_retina_forward.1} parent=23 // pred_fallthru
          _
      $region24: #{_retina_forward.1} parent=5 // pred_fallthru
        _
      %p210 = scmp.le.s32.totalorder 1, %s17
      %p211 = scmp.lt.s32.totalorder %s17, 4
      %p212 = pnand %p210, %p211
      %p213 = pneg %p212
      // Predicated region
      $region29: #{_retina_forward.1} parent=5 // pred_check
        _
      $region30: #{_retina_forward.1} parent=5 // pred_check_branch
        %215 = sbr.rel (%p212) target = $region32
      $region31: #{_retina_forward.1} parent=5 // pred_region
        %s216 = ssub.s32 %s17, 1
        %s217 = sand.u32 %s42, 1
        %s218 = scalar_lea.sflag [#allocation3], %s217
        %s219 = sand.u32 %s42, 1
        %s220 = smul.addr %s219, 16
        %s221 = scalar_lea.vmem [#allocation2], %s220
        // Predicated region
        $region33: #{_retina_forward.1} parent=31 // pred_check
          %p222 = pneg %p55
        $region34: #{_retina_forward.1} parent=31 // pred_check_branch
          %224 = sbr.rel (%p222) target = $region36
        $region35: #{_retina_forward.1} parent=31 // pred_region
          %225 = dma.done %s218, 256
        $region36: #{_retina_forward.1} parent=31 // pred_fallthru
          _
        %s226 = sand.u32 %s42, 1
        %s227 = scalar_lea.sflag [#allocation3], %s226
        %s228 = sand.u32 %s42, 1
        %s229 = smul.addr %s228, 16
        %s230 = scalar_lea.vmem [#allocation2], %s229
        %p231 = pneg %p55
        %p232 = pneg %p52
        %s233 = smul.u32 4, %s27
        %p234 = scmp.lt.s32.totalorder %s233, 3
        %s235 = scalar_select %p234, %s233, 3
        %s236 = smul.addr %s235, 4
        %s237 = scalar_lea.vmem %s1, %s236
        %p238 = pneg %p81
        %p239 = pneg %p78
        %p240 = pneg %p102
        %p241 = pneg %p99
        %p242 = pneg %p130
        %p243 = pneg %p127
        %s244 = sand.u32 %s117, 1
        %s245 = scalar_lea.sflag [#allocation4], %s244
        %s246 = sand.u32 %s117, 1
        %s247 = smul.addr %s246, 32
        %s248 = scalar_lea.vmem [#allocation5], %s247
        %p249 = pneg %p158
        %p250 = pneg %p155
        %s251 = smul.u32 4, %s27
        %p252 = scmp.lt.s32.totalorder %s26, 2
        %s253 = scalar_select %p252, %s26, 2
        %p254 = scmp.lt.s32.totalorder %s251, 3
        %s255 = scalar_select %p254, %s251, 3
        %s256 = smul.addr %s253, 4
        %s257 = sadd.s32 %s255, %s256
        %s258 = smul.addr %s257, 8
        %s259 = scalar_lea.vmem %s4, %s258
        %s260 = smul.u32 4, %s27
        %p261 = scmp.lt.s32.totalorder %s260, 3
        %s262 = scalar_select %p261, %s260, 3
        %s263 = smul.addr %s262, 4
        %s264 = scalar_lea.vmem %s1, %s263
        %s265 = smul.u32 4, %s27
        %s266 = smul.u32 4, %s27
        %s267 = smul.u32 4, %s27
        %p268 = scmp.lt.s32.totalorder %s26, 2
        %s269 = scalar_select %p268, %s26, 2
        %p270 = scmp.lt.s32.totalorder %s267, 3
        %s271 = scalar_select %p270, %s267, 3
        %s272 = smul.addr %s269, 4
        %s273 = sadd.s32 %s271, %s272
        %s274 = smul.addr %s273, 8
        %s275 = scalar_lea.vmem %s4, %s274
        %s276 = smul.u32 4, %s27
        %v278 = vld [vmem:[%s221] sm:$0xff]
        %v279 = vld [vmem:[%s221 + $0x8] sm:$0xff]
        %v280 = vpack.c.bf16 %v279, %v278
        %v281 = vld [vmem:[%s264] sm:$0xf]
        %v282 = vld [vmem:[%s264 + $0x4] sm:$0xf]
        %v283 = vld [vmem:[%s264 + $0x8] sm:$0xf]
        %v284 = vld [vmem:[%s264 + $0xc] sm:$0xf]
        %v289 = vunpack.c.l.b16 %v281
        %v290 = vunpack.c.l.b16 %v282
        %v291 = vunpack.c.l.b16 %v283
        %v292 = vunpack.c.l.b16 %v284
        %v293 = vpack.c.b16 %v290, %v289
        %v294 = vpack.c.b16 %v292, %v291
        %vm295 = vcmask 130048
        %v297 = vsel %vm295, %v293, 0
        %v300 = vsel %vm295, %v294, 0
        %302 = vmatprep.subr.bf16.mxu0 0
        %303 = vmatpush1.bf16.msra.mxu0 0
        %304 = vmatprep.subr.bf16.mxu0 0
        %305 = vmatpush1.bf16.msra.mxu0 0
        %306 = vmatprep.subr.bf16.mxu0 0
        %307 = vmatpush1.bf16.msra.mxu0 0
        %308 = vmatprep.subr.bf16.mxu0 0
        %309 = vmatpush1.bf16.msra.mxu0 0
        %310 = vmatprep.subr.bf16.mxu0 0
        %311 = vmatpush1.bf16.msra.mxu0 0
        %312 = vmatprep.subr.bf16.mxu0 0
        %313 = vmatpush1.bf16.msra.mxu0 0
        %314 = vmatprep.subr.bf16.mxu0 0
        %315 = vmatpush1.bf16.msra.mxu0 0
        %316 = vmatprep.subr.bf16.mxu0 0
        %317 = vmatpush1.bf16.msra.mxu0 %v280
        %318 = vmatprep.subr.bf16.mxu0 0
        %319 = vmatpush2.bf16.msra.mxu0 0
        %320 = vmatprep.subr.bf16.mxu0 0
        %321 = vmatpush2.bf16.msra.mxu0 0
        %322 = vmatprep.subr.bf16.mxu0 0
        %323 = vmatpush2.bf16.msra.mxu0 0
        %324 = vmatprep.subr.bf16.mxu0 0
        %325 = vmatpush2.bf16.msra.mxu0 0
        %326 = vmatprep.subr.bf16.mxu0 0
        %327 = vmatpush2.bf16.msra.mxu0 0
        %328 = vmatprep.subr.bf16.mxu0 0
        %329 = vmatpush2.bf16.msra.mxu0 0
        %330 = vmatprep.subr.bf16.mxu0 0
        %331 = vmatpush2.bf16.msra.mxu0 0
        %332 = vmatprep.subr.bf16.mxu0 0
        %333 = vmatpush2.bf16.msra.mxu0 0
        %334 = vmatprep.mubr.bf16.mxu0 0
        %335 = vmatmul.mubr.bf16.gmra.mxu0 %v297
        %v336 = vpop.f32.mrf.mxu0
        %v337 = vadd.f32 0.0, %v336
        %v338 = vpop.f32.mrf.mxu0
        %v339 = vpop.f32.mrf.mxu0
        %v340 = vadd.f32 0.0, %v339
        %v341 = vpop.f32.mrf.mxu0
        %342 = vmatprep.mubr.bf16.mxu0 0
        %343 = vmatmul.mubr.bf16.gmra.mxu0 %v300
        %v344 = vpop.f32.mrf.mxu0
        %v345 = vadd.f32 0.0, %v344
        %v346 = vpop.f32.mrf.mxu0
        %v347 = vpop.f32.mrf.mxu0
        %v348 = vadd.f32 0.0, %v347
        %v349 = vpop.f32.mrf.mxu0
        %350 = vdwg.mxu0
        %v351 = vpack.c.bf16 %v340, %v337
        %v352 = vpack.c.bf16 %v348, %v345
        %v353 = vld [vmem:[%s2] sm:$0xf]
        %v354 = vld [vmem:[%s2 + $0x4] sm:$0xf]
        %v357 = vunpack.c.l.b16 %v353
        %v358 = vunpack.c.l.b16 %v354
        %v359 = vpack.c.b16 %v358, %v357
        %v362 = vsel %vm295, %v351, 0
        %v365 = vsel %vm295, %v352, 0
        %367 = vmatprep.subr.bf16.mxu0 0
        %368 = vmatpush1.bf16.msra.mxu0 0
        %369 = vmatprep.subr.bf16.mxu0 0
        %370 = vmatpush1.bf16.msra.mxu0 0
        %371 = vmatprep.subr.bf16.mxu0 0
        %372 = vmatpush1.bf16.msra.mxu0 0
        %373 = vmatprep.subr.bf16.mxu0 0
        %374 = vmatpush1.bf16.msra.mxu0 0
        %375 = vmatprep.subr.bf16.mxu0 0
        %376 = vmatpush1.bf16.msra.mxu0 0
        %377 = vmatprep.subr.bf16.mxu0 0
        %378 = vmatpush1.bf16.msra.mxu0 0
        %379 = vmatprep.subr.bf16.mxu0 0
        %380 = vmatpush1.bf16.msra.mxu0 0
        %381 = vmatprep.subr.bf16.mxu0 0
        %382 = vmatpush1.bf16.msra.mxu0 %v359
        %383 = vmatprep.subr.bf16.mxu0 0
        %384 = vmatpush2.bf16.msra.mxu0 0
        %385 = vmatprep.subr.bf16.mxu0 0
        %386 = vmatpush2.bf16.msra.mxu0 0
        %387 = vmatprep.subr.bf16.mxu0 0
        %388 = vmatpush2.bf16.msra.mxu0 0
        %389 = vmatprep.subr.bf16.mxu0 0
        %390 = vmatpush2.bf16.msra.mxu0 0
        %391 = vmatprep.subr.bf16.mxu0 0
        %392 = vmatpush2.bf16.msra.mxu0 0
        %393 = vmatprep.subr.bf16.mxu0 0
        %394 = vmatpush2.bf16.msra.mxu0 0
        %395 = vmatprep.subr.bf16.mxu0 0
        %396 = vmatpush2.bf16.msra.mxu0 0
        %397 = vmatprep.subr.bf16.mxu0 0
        %398 = vmatpush2.bf16.msra.mxu0 0
        %399 = vmatprep.mubr.bf16.mxu0 0
        %400 = vmatmul.mubr.bf16.gmra.mxu0 %v362
        %v401 = vpop.f32.mrf.mxu0
        %v402 = vadd.f32 0.0, %v401
        %v403 = vpop.f32.mrf.mxu0
        %v404 = vpop.f32.mrf.mxu0
        %v405 = vadd.f32 0.0, %v404
        %v406 = vpop.f32.mrf.mxu0
        %407 = vmatprep.mubr.bf16.mxu0 0
        %408 = vmatmul.mubr.bf16.gmra.mxu0 %v365
        %v409 = vpop.f32.mrf.mxu0
        %v410 = vadd.f32 0.0, %v409
        %v411 = vpop.f32.mrf.mxu0
        %v412 = vpop.f32.mrf.mxu0
        %v413 = vadd.f32 0.0, %v412
        %v414 = vpop.f32.mrf.mxu0
        %415 = vdwg.mxu0
        %416 = vst [vmem:[%s248] sm:$0xff] %v402
        %417 = vst [vmem:[%s248 + $0x8] sm:$0xff] %v405
        %418 = vst [vmem:[%s248 + $0x10] sm:$0xff] %v410
        %419 = vst [vmem:[%s248 + $0x18] sm:$0xff] %v413
        %420 = vadd.xlane.f32.xlu0 %v402
        %v421 = vpop.xlane.xlu0 %420
        %422 = vadd.xlane.f32.xlu0 %v405
        %v423 = vpop.xlane.xlu0 %422
        %424 = vadd.xlane.f32.xlu0 %v410
        %v425 = vpop.xlane.xlu0 %424
        %426 = vadd.xlane.f32.xlu0 %v413
        %v427 = vpop.xlane.xlu0 %426
        %428 = vst [vmem:[%s275] sm:$0xff] %v421
        %429 = vst [vmem:[%s275 + $0x8] sm:$0xff] %v423
        %430 = vst [vmem:[%s275 + $0x10] sm:$0xff] %v425
        %431 = vst [vmem:[%s275 + $0x18] sm:$0xff] %v427
        %s432 = sand.u32 %s117, 1
        %s433 = scalar_lea.sflag [#allocation4], %s432
        %s434 = sand.u32 %s117, 1
        %s435 = smul.addr %s434, 32
        %s436 = scalar_lea.vmem [#allocation5], %s435
        %s437 = smul.u32 4, %s27
        %p438 = scmp.lt.s32.totalorder %s26, 2
        %s439 = scalar_select %p438, %s26, 2
        %p440 = scmp.lt.s32.totalorder %s437, 3
        %s441 = scalar_select %p440, %s437, 3
        %s442 = smul.addr %s439, 4
        %s443 = sadd.s32 %s441, %s442
        %s444 = smul.addr %s443, 8
        %s445 = scalar_lea.vmem %s4, %s444
        // Predicated region
        $region37: #{_retina_forward.1} parent=31 // pred_check
          %p446 = pneg %p127
        $region38: #{_retina_forward.1} parent=31 // pred_check_branch
          %448 = sbr.rel (%p446) target = $region40
        $region39: #{_retina_forward.1} parent=31 // pred_region
          %s449 = smul.u32 4, %s27
          %s451 = ssub.s32 512, 512
          %452 = vsyncadd %s433, %s451
          %s453 = smul.addr %s26, 4
          %s454 = sadd.s32 %s449, %s453
          %s455 = smul.addr %s454, 128
          %s456 = scalar_lea.hbm %s3, %s455
          %s457 = sshll.u32 %s436, 4
          %s458 = int_to_ptr.vmem [resolvable:$true] %s457
          %463 = dma.vmem_to_hbm [thread:$0]  %s458, 512, %s456, %s433, 128, 128, 8
        $region40: #{_retina_forward.1} parent=31 // pred_fallthru
          _
        // Predicated region
        $region41: #{_retina_forward.1} parent=31 // pred_check
          %p464 = pneg %p155
        $region42: #{_retina_forward.1} parent=31 // pred_check_branch
          %466 = sbr.rel (%p464) target = $region44
        $region43: #{_retina_forward.1} parent=31 // pred_region
          %s467 = smul.u32 4, %s27
        $region44: #{_retina_forward.1} parent=31 // pred_fallthru
          _
      $region32: #{_retina_forward.1} parent=5 // pred_fallthru
        _
      %p468 = scmp.le.s32.totalorder 2, %s17
      // Predicated region
      $region45: #{_retina_forward.1} parent=5 // pred_check
        %p469 = pneg %p468
      $region46: #{_retina_forward.1} parent=5 // pred_check_branch
        %471 = sbr.rel (%p469) target = $region48
      $region47: #{_retina_forward.1} parent=5 // pred_region
        %s472 = ssub.s32 %s17, 2
        // Predicated region
        $region49: #{_retina_forward.1} parent=47 // pred_check
          %p473 = pneg %p133
        $region50: #{_retina_forward.1} parent=47 // pred_check_branch
          %475 = sbr.rel (%p473) target = $region52
        $region51: #{_retina_forward.1} parent=47 // pred_region
          %s476 = sand.u32 %s118, 1
          %s477 = scalar_lea.sflag [#allocation4], %s476
          %s478 = sand.u32 %s118, 1
          %s479 = smul.addr %s478, 32
          %s480 = scalar_lea.vmem [#allocation5], %s479
          %481 = dma.done %s477, 512
        $region52: #{_retina_forward.1} parent=47 // pred_fallthru
          _
        // Predicated region
        $region53: #{_retina_forward.1} parent=47 // pred_check
          %p482 = pneg %p161
        $region54: #{_retina_forward.1} parent=47 // pred_check_branch
          %484 = sbr.rel (%p482) target = $region56
        $region55: #{_retina_forward.1} parent=47 // pred_region
          %s485 = smul.u32 4, %s29
          %p486 = scmp.lt.s32.totalorder %s28, 2
          %s487 = scalar_select %p486, %s28, 2
          %p488 = scmp.lt.s32.totalorder %s485, 3
          %s489 = scalar_select %p488, %s485, 3
          %s490 = smul.addr %s487, 4
          %s491 = sadd.s32 %s489, %s490
          %s492 = smul.addr %s491, 8
          %s493 = scalar_lea.vmem %s4, %s492
        $region56: #{_retina_forward.1} parent=47 // pred_fallthru
          _
      $region48: #{_retina_forward.1} parent=5 // pred_fallthru
        _
    $region6: #{_retina_forward.1} parent=1 // loop_footer
      %s21 = sadd.s32 1, %s17
    $region7: #{_retina_forward.1} parent=1 // loop_footer_branch
      %16 = sbr.rel target = $region3
    $region8: #{_retina_forward.1} parent=1 // loop_exit
      _
    %494 = vsyncpa [#allocation3], 1
    %s495 = scalar_lea.sflag [#allocation3], 1
    %496 = vsyncpa %s495, 1
    %497 = vsyncpa [#allocation4], 1
    %s498 = scalar_lea.sflag [#allocation4], 1
    %499 = vsyncpa %s498, 1

</llo_original>
